<compile_context>
chip_gen: v7x
topology: tpu7x:2x2x1
jax: 0.10.0
libtpu: 0.0.40
codegen_flags: <defaults>
</compile_context>

<pallas_src>
import jax
import jax.numpy as jnp
from jax.experimental import pallas as pl
from jax.experimental.pallas import tpu as pltpu

_NEG_BIAS = jnp.float32(-1e30)  # effectively -inf for f32 softmax, avoids inf arithmetic


def _round_up(v, m):
    return ((v + m - 1) // m) * m


def _sublane_multiple(dtype):
    # Packed-tile sublane multiple: f32 -> 8, bf16 -> 16, int8/fp8 -> 32.
    return 8 * (4 // jnp.dtype(dtype).itemsize)


def _vmem_capacity_bytes():
    # Generation-aware VMEM size (128 MiB on v5e/v6e, 64 MiB/TC on v7x).
    try:
        return int(pltpu.get_tpu_info().vmem_capacity_bytes)
    except Exception:
        return 64 * 2**20  # conservative fallback: correct on every generation


def _categorical_logits_kernel(x_ref, w_ref, b_ref, logits_ref):
    # x_ref:      (TB, K)      input tile (f32 or bf16)
    # w_ref:      (K, N_pad)   W^T, single-buffered, resident across the whole grid
    # b_ref:      (1, N_pad)   bias (pad columns = -1e30), resident
    # logits_ref: (TB, N_pad)  normalized logits (log-probs), f32 or bf16
    raw = jnp.dot(x_ref[...], w_ref[...],
                  preferred_element_type=jnp.float32) + b_ref[...]
    # Numerically stable log-softmax along the last axis (all math in f32).
    m = jnp.max(raw, axis=-1, keepdims=True)
    shifted = raw - m
    denom = jnp.sum(jnp.exp(shifted), axis=-1, keepdims=True)
    logits_ref[...] = (shifted - jnp.log(denom)).astype(logits_ref.dtype)


def categorical_forward(x, w_t, b, *, block_b=1024, compute_dtype=None,
                        out_dtype=jnp.float32, unpad=True, min_grid_steps=2,
                        single_buffer_weights=True):
    """Fused linear + Categorical(logits=...) normalization.

    Args:
      x:   (B, K) float32 input features.
      w_t: (K, N) float32, transpose of the nn.Linear weight.
      b:   (N,)   float32 bias.
      block_b:       max batch rows per grid step (auto-shrunk to fit VMEM).
      compute_dtype: optional streaming dtype for x and W (e.g. jnp.bfloat16 — halves
                     input DMA bytes, ~3 decimal digits lost on raw logits); MXU
                     accumulation and softmax math stay in float32.
      out_dtype:     dtype of the emitted logits (bf16 halves HBM writeback).
      unpad:         if True return (B, N); if False return the padded (B_pad, N_pad)
                     buffer whose valid region is [:B, :N] (skips a wrapper HBM pass
                     when not fused under jit).
      min_grid_steps: keep at least this many grid steps when B is large enough so the
                      "parallel" batch axis can be split across v7x's 2 TensorCores.
      single_buffer_weights: single-buffer the grid-invariant weight/bias blocks.

    Returns:
      Normalized logits (log-probs). probs = exp(logits) — see `categorical_probs`.
    """
    B, K = x.shape
    Kw, N = w_t.shape
    assert Kw == K, "w_t must be (num_inputs, num_outputs)"

    in_dtype = jnp.dtype(compute_dtype) if compute_dtype is not None else jnp.dtype(x.dtype)
    out_dtype = jnp.dtype(out_dtype)

    # ---- lane-dense output: pad N up to a multiple of 128 -------------------
    N_pad = _round_up(N, 128)
    if N_pad != N:
        w_t = jnp.pad(w_t, ((0, 0), (0, N_pad - N)))                  # zero cols
        b = jnp.pad(b, (0, N_pad - N), constant_values=_NEG_BIAS)     # -inf-ish

    if compute_dtype is not None:
        x = x.astype(compute_dtype)
        w_t = w_t.astype(compute_dtype)
    b2d = b.reshape(1, N_pad).astype(jnp.float32)

    # ---- batch tiling (ragged-aware, packed-sublane aligned) -----------------
    sub = max(_sublane_multiple(in_dtype), _sublane_multiple(out_dtype))
    x_item = in_dtype.itemsize
    w_item = jnp.dtype(w_t.dtype).itemsize
    o_item = out_dtype.itemsize

    vmem_cap = _vmem_capacity_bytes()
    cap = (3 * vmem_cap) // 4            # ~48 MiB on v7x, ~96 MiB on v5e/v6e

    block_b = max(sub, int(block_b))
    min_grid_steps = max(1, int(min_grid_steps))
    n_tiles = max(pl.cdiv(B, block_b),
                  min_grid_steps if B >= min_grid_steps * sub else 1)
    TB = _round_up(pl.cdiv(B, n_tiles), sub)

    w_bufs = 1 if single_buffer_weights else 2
    resident = w_bufs * (K * N_pad * w_item + N_pad * 4)              # weight + bias

    def _block_bytes(tb):                                             # double-buffered x / out
        return 2 * tb * K * x_item + 2 * tb * N_pad * o_item

    while TB > sub and resident + _block_bytes(TB) > cap:
        TB = _round_up(TB // 2, sub)

    B_pad = _round_up(B, TB)
    if B_pad != B:
        x = jnp.pad(x, ((0, B_pad - B), (0, 0)))
    grid = (B_pad // TB,)

    # ---- VMEM budget: never clamp below the requirement, never above physical
    needed = resident + _block_bytes(TB)
    vmem_limit = max(needed + needed // 4 + (1 << 20), 32 * 2**20)
    vmem_limit = min(vmem_limit, cap)
    vmem_limit = max(vmem_limit, needed + (1 << 20))
    vmem_limit = int(min(vmem_limit, vmem_cap))

    if single_buffer_weights:
        w_spec = pl.BlockSpec((K, N_pad), lambda i: (0, 0), pipeline_mode=pl.Buffered(1))
        b_spec = pl.BlockSpec((1, N_pad), lambda i: (0, 0), pipeline_mode=pl.Buffered(1))
    else:
        w_spec = pl.BlockSpec((K, N_pad), lambda i: (0, 0))
        b_spec = pl.BlockSpec((1, N_pad), lambda i: (0, 0))

    cost = pl.CostEstimate(
        flops=2 * B_pad * K * N_pad,
        transcendentals=B_pad * N_pad,
        bytes_accessed=(B_pad * K * x_item + K * N_pad * w_item + N_pad * 4
                        + B_pad * N_pad * o_item),
    )

    logits = pl.pallas_call(
        _categorical_logits_kernel,
        out_shape=jax.ShapeDtypeStruct((B_pad, N_pad), out_dtype),
        grid=grid,
        in_specs=[
            pl.BlockSpec((TB, K), lambda i: (i, 0)),    # streamed batch tiles
            w_spec,                                     # weight: VMEM-resident, single-buffered
            b_spec,                                     # bias:   VMEM-resident, single-buffered
        ],
        out_specs=pl.BlockSpec((TB, N_pad), lambda i: (i, 0)),
        compiler_params=pltpu.CompilerParams(
            dimension_semantics=("parallel",),          # megacore sharding on v7x
            vmem_limit_bytes=vmem_limit,
        ),
        cost_estimate=cost,
    )(x, w_t, b2d)

    if unpad:
        logits = logits[:B, :N]    # fuses with the kernel's consumer under jit
    return logits


def categorical_probs(logits):
    """probs = exp(log_softmax(raw)) == softmax(raw). Kept out of the kernel so the
    consumer fuses it (under jit) and the kernel writes a single HBM stream."""
    return jnp.exp(logits)


def init_categorical_params(key, num_inputs, num_outputs, gain=0.01):
    """Orthogonal init (gain=0.01) + zero bias, mirroring
    init_ = orthogonal_(weight, gain=0.01), constant_(bias, 0)."""
    a = jax.random.normal(key, (num_outputs, num_inputs), dtype=jnp.float32)
    if num_outputs < num_inputs:
        q, r = jnp.linalg.qr(a.T)                 # q: (num_inputs, num_outputs)
        d = jnp.sign(jnp.diagonal(r))             # (num_outputs,)
        w = (q * d[None, :]).T                    # (num_outputs, num_inputs)
    else:
        q, r = jnp.linalg.qr(a)                   # q: (num_outputs, num_inputs)
        d = jnp.sign(jnp.diagonal(r))             # (num_inputs,)
        w = q * d[None, :]                        # scale columns (fixed sign corr.)
    w = gain * w                                  # (num_outputs, num_inputs)
    w_t = w.T.astype(jnp.float32)                 # (num_inputs, num_outputs)
    b = jnp.zeros((num_outputs,), dtype=jnp.float32)
    return w_t, b


if __name__ == "__main__":
    key = jax.random.PRNGKey(0)
    k_x, k_w = jax.random.split(key)

    batch = 8
    num_inputs = 32
    num_outputs = 16

    x = jax.random.normal(k_x, (batch, num_inputs), dtype=jnp.float32)
    w_t, b = init_categorical_params(k_w, num_inputs, num_outputs, gain=0.01)

    # jit the whole head so the unpad slice and the consumer-side exp fuse around the kernel.
    @jax.jit
    def forward(x):
        logits = categorical_forward(x, w_t, b)
        return logits, categorical_probs(logits)

    logits, probs = forward(x)
    jax.block_until_ready((logits, probs))

    # Reference in plain JAX (same math as torch.distributions.Categorical).
    raw_ref = x @ w_t + b
    logits_ref = raw_ref - jax.scipy.special.logsumexp(raw_ref, axis=-1, keepdims=True)
    probs_ref = jax.nn.softmax(raw_ref, axis=-1)
    assert logits.shape == (batch, num_outputs)
    assert probs.shape == (batch, num_outputs)
    assert jnp.allclose(logits, logits_ref, atol=1e-5, rtol=1e-5)
    assert jnp.allclose(probs, probs_ref, atol=1e-5, rtol=1e-5)
    assert jnp.allclose(jnp.sum(probs, axis=-1), 1.0, atol=1e-5)

    print("KERNEL_OK")
</pallas_src>

<mosaic_0001>
module attributes {stable_mosaic.version = 11 : i64} {
  func.func @_categorical_logits_kernel(%arg0: i32, %arg1: memref<8x32xf32, #tpu.memory_space<vmem>>, %arg2: memref<32x128xf32, #tpu.memory_space<vmem>>, %arg3: memref<1x128xf32, #tpu.memory_space<vmem>>, %arg4: memref<8x128xf32, #tpu.memory_space<vmem>>) attributes {dimension_semantics = [#tpu.dimension_semantics<parallel>], iteration_bounds = array<i64: 1>, scalar_prefetch = 0 : i64, scratch_operands = 0 : i64, tpu.core_type = #tpu.core_type<tc>, window_params = [{transform_indices = @transform_0, window_bounds = array<i64: 8, 32>}, {pipeline_mode = #tpu.pipeline_mode<synchronous>, transform_indices = @transform_1, window_bounds = array<i64: 32, 128>}, {pipeline_mode = #tpu.pipeline_mode<synchronous>, transform_indices = @transform_2, window_bounds = array<i64: 1, 128>}, {transform_indices = @transform_3, window_bounds = array<i64: 8, 128>}]} {
    %c0 = arith.constant 0 : index
    %c0_0 = arith.constant 0 : index
    %0 = vector.load %arg1[%c0, %c0_0] : memref<8x32xf32, #tpu.memory_space<vmem>>, vector<8x32xf32>
    %c0_1 = arith.constant 0 : index
    %c0_2 = arith.constant 0 : index
    %1 = vector.load %arg2[%c0_1, %c0_2] : memref<32x128xf32, #tpu.memory_space<vmem>>, vector<32x128xf32>
    %cst = arith.constant dense<0.000000e+00> : vector<8x128xf32>
    %2 = tpu.matmul %0, %1, %cst {dimension_numbers = #tpu.dot_dimension_numbers<[1], [0], [0], [1], [0, 0, 1, 1], [], []>} : vector<8x32xf32>, vector<32x128xf32>, vector<8x128xf32> -> vector<8x128xf32>
    %c0_3 = arith.constant 0 : index
    %c0_4 = arith.constant 0 : index
    %3 = vector.load %arg3[%c0_3, %c0_4] : memref<1x128xf32, #tpu.memory_space<vmem>>, vector<1x128xf32>
    %4 = vector.broadcast %3 : vector<1x128xf32> to vector<8x128xf32>
    %5 = arith.addf %2, %4 : vector<8x128xf32>
    %cst_5 = arith.constant dense<0xFF800000> : vector<8xf32>
    %6 = vector.multi_reduction <maximumf>, %5, %cst_5 [1] : vector<8x128xf32> to vector<8xf32>
    %7 = vector.shape_cast %6 : vector<8xf32> to vector<8x1xf32>
    %8 = vector.broadcast %7 : vector<8x1xf32> to vector<8x128xf32>
    %9 = arith.subf %5, %8 : vector<8x128xf32>
    %10 = math.exp %9 : vector<8x128xf32>
    %cst_6 = arith.constant dense<0.000000e+00> : vector<8xf32>
    %11 = vector.multi_reduction <add>, %10, %cst_6 [1] : vector<8x128xf32> to vector<8xf32>
    %12 = vector.shape_cast %11 : vector<8xf32> to vector<8x1xf32>
    %13 = math.log %12 : vector<8x1xf32>
    %14 = vector.broadcast %13 : vector<8x1xf32> to vector<8x128xf32>
    %15 = arith.subf %9, %14 : vector<8x128xf32>
    %c0_7 = arith.constant 0 : index
    %c0_8 = arith.constant 0 : index
    %16 = vector.load %arg4[%c0_7, %c0_8] : memref<8x128xf32, #tpu.memory_space<vmem>>, vector<8x128xf32>
    tpu.vector_store %arg4[%c0_7, %c0_8], %15 {strides = array<i32>} : memref<8x128xf32, #tpu.memory_space<vmem>>, vector<8x128xf32>,
    return
  }
  func.func @transform_0(%arg0: i32) -> (i32, i32) {
    %c0_i32 = arith.constant 0 : i32
    %c0_i32_0 = arith.constant 0 : i32
    return %arg0, %c0_i32 : i32, i32
  }
  func.func @transform_1(%arg0: i32) -> (i32, i32) {
    %c0_i32 = arith.constant 0 : i32
    %c0_i32_0 = arith.constant 0 : i32
    %c0_i32_1 = arith.constant 0 : i32
    return %c0_i32, %c0_i32_0 : i32, i32
  }
  func.func @transform_2(%arg0: i32) -> (i32, i32) {
    %c0_i32 = arith.constant 0 : i32
    %c0_i32_0 = arith.constant 0 : i32
    %c0_i32_1 = arith.constant 0 : i32
    return %c0_i32, %c0_i32_0 : i32, i32
  }
  func.func @transform_3(%arg0: i32) -> (i32, i32) {
    %c0_i32 = arith.constant 0 : i32
    %c0_i32_0 = arith.constant 0 : i32
    return %arg0, %c0_i32 : i32, i32
  }
}

</mosaic_0001>

<llo_original>
// kernel: forward.1
$region0: #{forward.1}
  #allocation0 [shape = 'u32[]', space=smem, size = 0x4, offset = 0x4, fixed_abs, tag = 'smem constant byte address 0x4 - core index']
  #allocation1 [shape = 'u32[144,128]{1,0:T(1,128)}', space=vmem, size = 0x12000, scoped, tag = 'internal scratch']
  %s0 = inlined_call_operand.hbm [shape: f32[8,32], index: 0, kind: input, shape index: {}]
  %s1 = inlined_call_operand.hbm [shape: f32[32,128], index: 1, kind: input, shape index: {}]
  %s2 = inlined_call_operand.vmem [shape: f32[1,128], index: 2, kind: input, shape index: {}]
  %s3 = inlined_call_operand.vmem [shape: f32[8,128], index: 3, kind: output, shape index: {}]
  %s4 = sld [smem:[#allocation0]]
  $region30: #{forward.1} parent=0
    _
  %s6 = ssub.s32 1, %s4
  %s7 = scalar_select 0, %s6, %s4
  $region1: #{forward.1} parent=0
    #allocation2 [shape = 'u8[4096]{0}', space=vmem, size = 0x1000, scoped, tag = 'input window, operand 0, single buffered']
    #allocation3 [shape = 's32[1]{0}', space=sflag, size = 0x4, scoped, tag = 'scoped memory for forward.1']
    #allocation4 [shape = 'u8[16384]{0}', space=vmem, size = 0x4000, scoped, tag = 'input window, operand 1, single buffered']
    #allocation5 [shape = 's32[1]{0}', space=sflag, size = 0x4, scoped, tag = 'scoped memory for forward.1']
    %8 = vsyncpa [#allocation3], 0
    %9 = vsyncpa [#allocation5], 0
    // Predicated region
    $region2: #{forward.1} parent=1 // pred_check
      _
    $region3: #{forward.1} parent=1 // pred_check_branch
      %11 = sbr.rel (0) target = $region5
    $region4: #{forward.1} parent=1 // pred_region
      %s13 = ssub.s32 128, 128
      %14 = vsyncadd [#allocation3], %s13
      %s16 = sshll.u32 [#allocation2], 4
      %s17 = int_to_ptr.vmem [resolvable:$true] %s16
      %19 = dma.hbm_to_vmem [thread:$0]  %s0, 128, %s17, [#allocation3]
    $region5: #{forward.1} parent=1 // pred_fallthru
      _
    // Predicated region
    $region6: #{forward.1} parent=1 // pred_check
      _
    $region7: #{forward.1} parent=1 // pred_check_branch
      %21 = sbr.rel (0) target = $region9
    $region8: #{forward.1} parent=1 // pred_region
      %s23 = ssub.s32 512, 512
      %24 = vsyncadd [#allocation5], %s23
      %s25 = sshll.u32 [#allocation4], 4
      %s26 = int_to_ptr.vmem [resolvable:$true] %s25
      %31 = dma.hbm_to_vmem [thread:$0]  %s1, 512, %s26, [#allocation5], 128, 128, 8
    $region9: #{forward.1} parent=1 // pred_fallthru
      _
    // Predicated region
    $region10: #{forward.1} parent=1 // pred_check
      _
    $region11: #{forward.1} parent=1 // pred_check_branch
      %33 = sbr.rel (0) target = $region13
    $region12: #{forward.1} parent=1 // pred_region
      _
    $region13: #{forward.1} parent=1 // pred_fallthru
      _
    // Predicated region
    $region14: #{forward.1} parent=1 // pred_check
      _
    $region15: #{forward.1} parent=1 // pred_check_branch
      %35 = sbr.rel (0) target = $region17
    $region16: #{forward.1} parent=1 // pred_region
      %36 = dma.done [#allocation3], 128
    $region17: #{forward.1} parent=1 // pred_fallthru
      _
    // Predicated region
    $region18: #{forward.1} parent=1 // pred_check
      _
    $region19: #{forward.1} parent=1 // pred_check_branch
      %38 = sbr.rel (0) target = $region21
    $region20: #{forward.1} parent=1 // pred_region
      %39 = dma.done [#allocation5], 512
    $region21: #{forward.1} parent=1 // pred_fallthru
      _
    %v40 = vld [vmem:[#allocation2] sm:$0xff]
    %v41 = vld [vmem:[#allocation4] sm:$0xff]
    %v42 = vld [vmem:[#allocation4 + $0x8] sm:$0xff]
    %v43 = vld [vmem:[#allocation4 + $0x10] sm:$0xff]
    %v44 = vld [vmem:[#allocation4 + $0x18] sm:$0xff]
    %v45 = vld [vmem:[%s2] sm:$0x1]
    %v47 = vlaneseq
    %v48 = vshrl.u32 %v47, 7
    %v49 = vsub.s32 0, %v48
    %v50 = vrot.slane %v45, %v49
    %vm52 = vcmask 261120
    %v54 = vsel %vm52, %v40, 0
    %56 = vmatprep.subr.mxu0 0.0
    %57 = vmatpush1.msra.mxu0 %v41
    %58 = vmatprep.subr.mxu0 0.0
    %59 = vmatpush1.msra.mxu0 %v42
    %60 = vmatprep.subr.mxu0 0.0
    %61 = vmatpush1.msra.mxu0 %v43
    %62 = vmatprep.subr.mxu0 0.0
    %63 = vmatpush1.msra.mxu0 %v44
    %64 = vmatprep.subr.mxu0 0.0
    %65 = vmatpush1.msra.mxu0 0.0
    %66 = vmatprep.subr.mxu0 0.0
    %67 = vmatpush1.msra.mxu0 0.0
    %68 = vmatprep.subr.mxu0 0.0
    %69 = vmatpush1.msra.mxu0 0.0
    %70 = vmatprep.subr.mxu0 0.0
    %71 = vmatpush1.msra.mxu0 0.0
    %72 = vmatprep.subr.mxu0 0.0
    %73 = vmatpush1.msra.mxu0 0.0
    %74 = vmatprep.subr.mxu0 0.0
    %75 = vmatpush1.msra.mxu0 0.0
    %76 = vmatprep.subr.mxu0 0.0
    %77 = vmatpush1.msra.mxu0 0.0
    %78 = vmatprep.subr.mxu0 0.0
    %79 = vmatpush1.msra.mxu0 0.0
    %80 = vmatprep.subr.mxu0 0.0
    %81 = vmatpush1.msra.mxu0 0.0
    %82 = vmatprep.subr.mxu0 0.0
    %83 = vmatpush1.msra.mxu0 0.0
    %84 = vmatprep.subr.mxu0 0.0
    %85 = vmatpush1.msra.mxu0 0.0
    %86 = vmatprep.subr.mxu0 0.0
    %87 = vmatpush1.msra.mxu0 0.0
    %88 = vmatprep.subr.mxu0 0.0
    %89 = vmatpush1.msra.mxu0 0.0
    %90 = vmatprep.subr.mxu0 0.0
    %91 = vmatpush1.msra.mxu0 0.0
    %92 = vmatprep.subr.mxu0 0.0
    %93 = vmatpush1.msra.mxu0 0.0
    %94 = vmatprep.subr.mxu0 0.0
    %95 = vmatpush1.msra.mxu0 0.0
    %96 = vmatprep.subr.mxu0 0.0
    %97 = vmatpush1.msra.mxu0 0.0
    %98 = vmatprep.subr.mxu0 0.0
    %99 = vmatpush1.msra.mxu0 0.0
    %100 = vmatprep.subr.mxu0 0.0
    %101 = vmatpush1.msra.mxu0 0.0
    %102 = vmatprep.subr.mxu0 0.0
    %103 = vmatpush1.msra.mxu0 0.0
    %104 = vmatprep.subr.mxu0 0.0
    %105 = vmatpush1.msra.mxu0 0.0
    %106 = vmatprep.subr.mxu0 0.0
    %107 = vmatpush1.msra.mxu0 0.0
    %108 = vmatprep.subr.mxu0 0.0
    %109 = vmatpush1.msra.mxu0 0.0
    %110 = vmatprep.subr.mxu0 0.0
    %111 = vmatpush1.msra.mxu0 0.0
    %112 = vmatprep.subr.mxu0 0.0
    %113 = vmatpush1.msra.mxu0 0.0
    %114 = vmatprep.subr.mxu0 0.0
    %115 = vmatpush1.msra.mxu0 0.0
    %116 = vmatprep.subr.mxu0 0.0
    %117 = vmatpush1.msra.mxu0 0.0
    %118 = vmatprep.subr.mxu0 0.0
    %119 = vmatpush1.msra.mxu0 0.0
    %120 = vmatprep.mubr.f32.mxu0 0.0
    %121 = vmatmul.mubr.f32.gmra.mrb[0].mxu0 %v54
    %v122 = vpop.f32.mrb[0].mxu0
    %v123 = vadd.f32 %v50, %v122
    %v124 = vpop.f32.mrb[0].mxu0
    %125 = vdwg.mxu0
    %126 = vmax.xlane.f32.xlu0 %v123
    %v127 = vpop.xlane.xlu0 %126
    %v128 = vsub.f32 %v123, %v127
    %v129 = vmul.f32 %v128, 1.442695
    %v130 = vpow.pop %v129
    %131 = vadd.xlane.f32.xlu0 %v130
    %v132 = vpop.xlane.xlu0 %131
    %v133 = vlog2.pop %v132
    %v134 = vmul.f32 %v133, 0.6931472
    %v135 = vsub.f32 %v128, %v134
    %136 = vst [vmem:[%s3] sm:$0xff] %v135
    // Predicated region
    $region22: #{forward.1} parent=1 // pred_check
      _
    $region23: #{forward.1} parent=1 // pred_check_branch
      %138 = sbr.rel (0) target = $region25
    $region24: #{forward.1} parent=1 // pred_region
      _
    $region25: #{forward.1} parent=1 // pred_fallthru
      _
    // Predicated region
    $region26: #{forward.1} parent=1 // pred_check
      _
    $region27: #{forward.1} parent=1 // pred_check_branch
      %140 = sbr.rel (0) target = $region29
    $region28: #{forward.1} parent=1 // pred_region
      _
    $region29: #{forward.1} parent=1 // pred_fallthru
      _
    %141 = vsyncpa [#allocation3], 1
    %142 = vsyncpa [#allocation5], 1

</llo_original>
